<compile_context>
chip_gen: v7x
topology: tpu7x:2x2x1
jax: 0.10.0
libtpu: 0.0.40
codegen_flags: <defaults>
</compile_context>

<pallas_src>
import functools

import jax
import jax.numpy as jnp
from jax.experimental import pallas as pl
from jax.experimental.pallas import tpu as pltpu


def _candlenet_kernel(x_ref, w1t_ref, bw_ref, b2_ref, o_ref, *, chunk):
    """One batch tile.

    x_ref  : (tile_b, D) bf16  -- batch on sublanes, features on lanes
    w1t_ref: (H, D)      bf16  -- resident across the whole grid
    bw_ref : (H, 2)      f32   -- column 0 = b1, column 1 = w2
    b2_ref : (1, 1)      f32   -- SMEM scalar
    o_ref  : (1, tile_b) f32   -- lane-dense output row
    """
    b1 = bw_ref[:, 0:1]          # (H, 1) f32
    w2 = bw_ref[:, 1:2]          # (H, 1) f32
    b2 = b2_ref[0, 0]            # scalar f32
    num_chunks = o_ref.shape[1] // chunk

    def body(c, carry):
        off = pl.multiple_of(c * chunk, chunk)
        xc = x_ref[pl.ds(off, chunk), :]                        # (chunk, D) bf16
        # Hidden layer, transposed: h_c = relu(W1^T @ x_c^T + b1) -> (H, chunk)
        # MXU matmul with f32 accumulation; batch lands on lanes.
        h = jax.lax.dot_general(
            w1t_ref[...], xc,
            dimension_numbers=(((1,), (1,)), ((), ())),
            preferred_element_type=jnp.float32)
        h = jnp.maximum(h + b1, 0.0)
        # Output unit (N=1): VPU multiply + XLU cross-sublane reduce instead of
        # pushing a 1/128-utilized column through the MXU.
        out = jnp.sum(h * w2, axis=0, keepdims=True) + b2       # (1, chunk) f32
        o_ref[:, pl.ds(off, chunk)] = out.astype(o_ref.dtype)   # unmasked vst
        return carry

    jax.lax.fori_loop(0, num_chunks, body, 0, unroll=True)


def _round_up(a, m):
    return (a + m - 1) // m * m


def candlenet_forward(x, w1, b1, w2, b2, *, tile_b=1024, chunk=128):
    """CandleNet forward: relu(x @ w1 + b1) @ w2 + b2.

    x : (B, D)
    w1: (D, H)   (pre-transposed vs. PyTorch's (H, D) Linear weight)
    b1: (H,)
    w2: (H,)     (PyTorch's (1, H) second Linear weight, flattened)
    b2: (1,)
    returns (B, 1) f32, identical to nn.Sequential(Linear, ReLU, Linear).
    """
    B, D = x.shape
    H = w1.shape[1]
    assert chunk % 128 == 0, "chunk must be lane-dense (multiple of 128)"

    # Tile selection: tile_b is a multiple of `chunk` so every in-kernel store
    # is a full 128-lane row; cap it so v7x's two TensorCores both get tiles.
    tile_b = _round_up(max(chunk, min(tile_b, _round_up(B, chunk))), chunk)
    if B > 2 * chunk:
        tile_b = min(tile_b, _round_up(pl.cdiv(B, 2), chunk))
    num_tiles = pl.cdiv(B, tile_b)
    b_pad = num_tiles * tile_b

    # MXU inputs in bf16 (accumulation stays f32 in-kernel). The ragged-
    # remainder pad (if any) is applied to the bf16 copy so XLA fuses it with
    # the cast -- no extra full-size f32 HBM pass over x.
    xb = x.astype(jnp.bfloat16)
    if b_pad != B:
        xb = jnp.pad(xb, ((0, b_pad - B), (0, 0)))
    w1t = w1.T.astype(jnp.bfloat16)                           # (H, D)
    bw = jnp.stack([b1, w2], axis=1).astype(jnp.float32)      # (H, 2)
    b2s = jnp.reshape(b2, (1, 1)).astype(jnp.float32)         # SMEM scalar

    out_row = pl.pallas_call(
        functools.partial(_candlenet_kernel, chunk=chunk),
        out_shape=jax.ShapeDtypeStruct((1, b_pad), jnp.float32),
        grid=(num_tiles,),
        in_specs=[
            # x tile: pipelined over the batch grid axis (natural layout).
            pl.BlockSpec((tile_b, D), lambda i: (i, 0)),
            # Weights / packed biases: same block every step -> DMA'd once,
            # stay resident in VMEM.
            pl.BlockSpec((H, D), lambda i: (0, 0)),
            pl.BlockSpec((H, 2), lambda i: (0, 0)),
            # b2: scalar in SMEM (no VMEM tile, no lane padding).
            pl.BlockSpec(memory_space=pltpu.MemorySpace.SMEM),
        ],
        out_specs=pl.BlockSpec((1, tile_b), lambda i: (0, i)),
        compiler_params=pltpu.CompilerParams(
            dimension_semantics=("parallel",)),               # megacore on v7x
    )(xb, w1t, bw, b2s)

    return out_row[0, :B].reshape(B, 1)


def init_params(key, input_size, hidden_size):
    # Deterministic init mimicking PyTorch nn.Linear default:
    # U(-1/sqrt(fan_in), 1/sqrt(fan_in)) for both weight and bias.
    k1, k2, k3, k4 = jax.random.split(key, 4)
    bound1 = 1.0 / jnp.sqrt(jnp.float32(input_size))
    bound2 = 1.0 / jnp.sqrt(jnp.float32(hidden_size))
    w1 = jax.random.uniform(k1, (input_size, hidden_size), jnp.float32, -bound1, bound1)
    b1 = jax.random.uniform(k2, (hidden_size,), jnp.float32, -bound1, bound1)
    w2 = jax.random.uniform(k3, (hidden_size,), jnp.float32, -bound2, bound2)
    b2 = jax.random.uniform(k4, (1,), jnp.float32, -bound2, bound2)
    return w1, b1, w2, b2


if __name__ == "__main__":
    key = jax.random.PRNGKey(0)
    k_x, k_p = jax.random.split(key)

    batch = 8
    input_size = 32
    hidden_size = 128

    x = jax.random.normal(k_x, (batch, input_size), jnp.float32)
    w1, b1, w2, b2 = init_params(k_p, input_size, hidden_size)

    out = jax.block_until_ready(candlenet_forward(x, w1, b1, w2, b2))
    assert out.shape == (batch, 1)

    # Precision-matched reference: bf16-rounded matmul inputs, f32 accumulation,
    # f32 elementwise second layer (same math as the kernel).
    xb = x.astype(jnp.bfloat16).astype(jnp.float32)
    w1b = w1.astype(jnp.bfloat16).astype(jnp.float32)
    h_ref = jnp.maximum(xb @ w1b + b1[None, :], 0.0)
    ref = jnp.sum(h_ref * w2[None, :], axis=1, keepdims=True) + b2
    assert jnp.allclose(out, ref, atol=1e-4, rtol=1e-4)

    # Loose sanity check against full-f32 math (bf16 MXU inputs only differ slightly).
    ref_f32 = jnp.maximum(x @ w1 + b1[None, :], 0.0) @ w2.reshape(-1, 1) + b2
    assert jnp.allclose(out, ref_f32, atol=5e-2, rtol=5e-2)

    print("KERNEL_OK")
</pallas_src>

<mosaic_0001>
module attributes {stable_mosaic.version = 11 : i64} {
  func.func @_candlenet_kernel(%arg0: i32, %arg1: memref<128x32xbf16, #tpu.memory_space<vmem>>, %arg2: memref<128x32xbf16, #tpu.memory_space<vmem>>, %arg3: memref<128x2xf32, #tpu.memory_space<vmem>>, %arg4: memref<1x1xf32, #tpu.memory_space<smem>>, %arg5: memref<1x128xf32, #tpu.memory_space<vmem>>) attributes {dimension_semantics = [#tpu.dimension_semantics<parallel>], iteration_bounds = array<i64: 1>, scalar_prefetch = 0 : i64, scratch_operands = 0 : i64, tpu.core_type = #tpu.core_type<tc>, window_params = [{transform_indices = @transform_0, window_bounds = array<i64: 128, 32>}, {pipeline_mode = #tpu.pipeline_mode<synchronous>, transform_indices = @transform_1, window_bounds = array<i64: 128, 32>}, {pipeline_mode = #tpu.pipeline_mode<synchronous>, transform_indices = @transform_2, window_bounds = array<i64: 128, 2>}, {transform_indices = @transform_3, window_bounds = array<i64: 1, 1>}, {transform_indices = @transform_4, window_bounds = array<i64: 1, 128>}]} {
    %c0 = arith.constant 0 : index
    %c0_0 = arith.constant 0 : index
    %0 = vector.load %arg3[%c0, %c0_0] : memref<128x2xf32, #tpu.memory_space<vmem>>, vector<128x1xf32>
    %c0_1 = arith.constant 0 : index
    %c1 = arith.constant 1 : index
    %1 = vector.load %arg3[%c0_1, %c1] : memref<128x2xf32, #tpu.memory_space<vmem>>, vector<128x1xf32>
    %c0_2 = arith.constant 0 : index
    %c0_3 = arith.constant 0 : index
    %2 = memref.load %arg4[%c0_2, %c0_3] : memref<1x1xf32, #tpu.memory_space<smem>>
    %c0_i32 = arith.constant 0 : i32
    %c128_i32 = arith.constant 128 : i32
    %3 = arith.muli %c0_i32, %c128_i32 : i32
    %4 = tpu.assume_multiple %3, 128 : i32
    %5 = arith.index_cast %4 : i32 to index
    %c0_4 = arith.constant 0 : index
    %6 = vector.load %arg1[%5, %c0_4] : memref<128x32xbf16, #tpu.memory_space<vmem>>, vector<128x32xbf16>
    %c0_5 = arith.constant 0 : index
    %c0_6 = arith.constant 0 : index
    %7 = vector.load %arg2[%c0_5, %c0_6] : memref<128x32xbf16, #tpu.memory_space<vmem>>, vector<128x32xbf16>
    %cst = arith.constant dense<0.000000e+00> : vector<128x128xf32>
    %8 = tpu.matmul %7, %6, %cst {dimension_numbers = #tpu.dot_dimension_numbers<[1], [1], [0], [0], [0, 0, 1, 0], [], []>} : vector<128x32xbf16>, vector<128x32xbf16>, vector<128x128xf32> -> vector<128x128xf32>
    %9 = vector.broadcast %0 : vector<128x1xf32> to vector<128x128xf32>
    %10 = arith.addf %8, %9 : vector<128x128xf32>
    %cst_7 = arith.constant 0.000000e+00 : f32
    %11 = vector.broadcast %cst_7 : f32 to vector<128x128xf32>
    %12 = arith.maximumf %10, %11 : vector<128x128xf32>
    %13 = vector.broadcast %1 : vector<128x1xf32> to vector<128x128xf32>
    %14 = arith.mulf %12, %13 : vector<128x128xf32>
    %cst_8 = arith.constant dense<0.000000e+00> : vector<128xf32>
    %15 = vector.multi_reduction <add>, %14, %cst_8 [0] : vector<128x128xf32> to vector<128xf32>
    %16 = vector.shape_cast %15 : vector<128xf32> to vector<1x128xf32>
    %17 = vector.broadcast %2 : f32 to vector<1x128xf32>
    %18 = arith.addf %16, %17 : vector<1x128xf32>
    %c0_9 = arith.constant 0 : index
    %19 = arith.index_cast %4 : i32 to index
    %20 = vector.load %arg5[%c0_9, %19] : memref<1x128xf32, #tpu.memory_space<vmem>>, vector<1x128xf32>
    tpu.vector_store %arg5[%c0_9, %19], %18 {strides = array<i32>} : memref<1x128xf32, #tpu.memory_space<vmem>>, vector<1x128xf32>,
    %c1_i32 = arith.constant 1 : i32
    return
  }
  func.func @transform_0(%arg0: i32) -> (i32, i32) {
    %c0_i32 = arith.constant 0 : i32
    %c0_i32_0 = arith.constant 0 : i32
    return %arg0, %c0_i32 : i32, i32
  }
  func.func @transform_1(%arg0: i32) -> (i32, i32) {
    %c0_i32 = arith.constant 0 : i32
    %c0_i32_0 = arith.constant 0 : i32
    %c0_i32_1 = arith.constant 0 : i32
    return %c0_i32, %c0_i32_0 : i32, i32
  }
  func.func @transform_2(%arg0: i32) -> (i32, i32) {
    %c0_i32 = arith.constant 0 : i32
    %c0_i32_0 = arith.constant 0 : i32
    %c0_i32_1 = arith.constant 0 : i32
    return %c0_i32, %c0_i32_0 : i32, i32
  }
  func.func @transform_3(%arg0: i32) -> (i32, i32) {
    %c0_i32 = arith.constant 0 : i32
    %c0_i32_0 = arith.constant 0 : i32
    %c0_i32_1 = arith.constant 0 : i32
    return %c0_i32, %c0_i32_0 : i32, i32
  }
  func.func @transform_4(%arg0: i32) -> (i32, i32) {
    %c0_i32 = arith.constant 0 : i32
    %c0_i32_0 = arith.constant 0 : i32
    return %c0_i32, %arg0 : i32, i32
  }
}

</mosaic_0001>

<llo_original>
// kernel: tpu_custom_call.1
$region0: #{tpu_custom_call.1}
  #allocation0 [shape = 'u32[]', space=smem, size = 0x4, offset = 0x4, fixed_abs, tag = 'smem constant byte address 0x4 - core index']
  #allocation1 [shape = 'u32[144,128]{1,0:T(1,128)}', space=vmem, size = 0x12000, scoped, tag = 'internal scratch']
  #allocation2 [shape = 'f32[1,1]{1,0:T(1,128)S(6)}', space=smem, size = 0x200, scoped, tag = 'scoped memory for tpu_custom_call.1']
  %s0 = inlined_call_operand.vmem [shape: bf16[128,32], index: 0, kind: input, shape index: {}]
  %s1 = inlined_call_operand.vmem [shape: bf16[128,32], index: 1, kind: input, shape index: {}]
  %s2 = inlined_call_operand.vmem [shape: f32[128,2], index: 2, kind: input, shape index: {}]
  %s3 = inlined_call_operand.<no memory space> [shape: f32[1,1], index: 3, kind: input, shape index: {}]
  %s4 = inlined_call_operand.hbm [shape: f32[1,128], index: 4, kind: output, shape index: {}]
  %s5 = sld [smem:[#allocation0]]
  $region26: #{tpu_custom_call.1} parent=0
    _
  %s7 = ssub.s32 1, %s5
  %s8 = scalar_select 0, %s7, %s5
  %9 = sst [smem:[#allocation2]] %s3
  $region1: #{tpu_custom_call.1} parent=0
    #allocation3 [shape = 'u8[512]{0}', space=vmem, size = 0x400, scoped, tag = 'output window, operand 0, single buffered']
    #allocation4 [shape = 's32[1]{0}', space=sflag, size = 0x4, scoped, tag = 'scoped memory for tpu_custom_call.1']
    %10 = vsyncpa [#allocation4], 0
    // Predicated region
    $region2: #{tpu_custom_call.1} parent=1 // pred_check
      _
    $region3: #{tpu_custom_call.1} parent=1 // pred_check_branch
      %12 = sbr.rel (0) target = $region5
    $region4: #{tpu_custom_call.1} parent=1 // pred_region
      _
    $region5: #{tpu_custom_call.1} parent=1 // pred_fallthru
      _
    // Predicated region
    $region6: #{tpu_custom_call.1} parent=1 // pred_check
      _
    $region7: #{tpu_custom_call.1} parent=1 // pred_check_branch
      %14 = sbr.rel (0) target = $region9
    $region8: #{tpu_custom_call.1} parent=1 // pred_region
      _
    $region9: #{tpu_custom_call.1} parent=1 // pred_fallthru
      _
    // Predicated region
    $region10: #{tpu_custom_call.1} parent=1 // pred_check
      _
    $region11: #{tpu_custom_call.1} parent=1 // pred_check_branch
      %16 = sbr.rel (0) target = $region13
    $region12: #{tpu_custom_call.1} parent=1 // pred_region
      _
    $region13: #{tpu_custom_call.1} parent=1 // pred_fallthru
      _
    // Predicated region
    $region14: #{tpu_custom_call.1} parent=1 // pred_check
      _
    $region15: #{tpu_custom_call.1} parent=1 // pred_check_branch
      %18 = sbr.rel (0) target = $region17
    $region16: #{tpu_custom_call.1} parent=1 // pred_region
      _
    $region17: #{tpu_custom_call.1} parent=1 // pred_fallthru
      _
    %v20 = vld [vmem:[%s2] sm:$0xff]
    %v21 = vld [vmem:[%s2 + $0x8] sm:$0xff]
    %v22 = vld [vmem:[%s2 + $0x10] sm:$0xff]
    %v23 = vld [vmem:[%s2 + $0x18] sm:$0xff]
    %v24 = vld [vmem:[%s2 + $0x20] sm:$0xff]
    %v25 = vld [vmem:[%s2 + $0x28] sm:$0xff]
    %v26 = vld [vmem:[%s2 + $0x30] sm:$0xff]
    %v27 = vld [vmem:[%s2 + $0x38] sm:$0xff]
    %v28 = vld [vmem:[%s2 + $0x40] sm:$0xff]
    %v29 = vld [vmem:[%s2 + $0x48] sm:$0xff]
    %v30 = vld [vmem:[%s2 + $0x50] sm:$0xff]
    %v31 = vld [vmem:[%s2 + $0x58] sm:$0xff]
    %v32 = vld [vmem:[%s2 + $0x60] sm:$0xff]
    %v33 = vld [vmem:[%s2 + $0x68] sm:$0xff]
    %v34 = vld [vmem:[%s2 + $0x70] sm:$0xff]
    %v35 = vld [vmem:[%s2 + $0x78] sm:$0xff]
    %s36 = sld [smem:[#allocation2]]
    %v37 = vld [vmem:[%s0] sm:$0xf]
    %v38 = vld [vmem:[%s0 + $0x4] sm:$0xf]
    %v39 = vld [vmem:[%s0 + $0x8] sm:$0xf]
    %v40 = vld [vmem:[%s0 + $0xc] sm:$0xf]
    %v41 = vld [vmem:[%s0 + $0x10] sm:$0xf]
    %v42 = vld [vmem:[%s0 + $0x14] sm:$0xf]
    %v43 = vld [vmem:[%s0 + $0x18] sm:$0xf]
    %v44 = vld [vmem:[%s0 + $0x1c] sm:$0xf]
    %v45 = vld [vmem:[%s0 + $0x20] sm:$0xf]
    %v46 = vld [vmem:[%s0 + $0x24] sm:$0xf]
    %v47 = vld [vmem:[%s0 + $0x28] sm:$0xf]
    %v48 = vld [vmem:[%s0 + $0x2c] sm:$0xf]
    %v49 = vld [vmem:[%s0 + $0x30] sm:$0xf]
    %v50 = vld [vmem:[%s0 + $0x34] sm:$0xf]
    %v51 = vld [vmem:[%s0 + $0x38] sm:$0xf]
    %v52 = vld [vmem:[%s0 + $0x3c] sm:$0xf]
    %v53 = vld [vmem:[%s1] sm:$0xf]
    %v54 = vld [vmem:[%s1 + $0x4] sm:$0xf]
    %v55 = vld [vmem:[%s1 + $0x8] sm:$0xf]
    %v56 = vld [vmem:[%s1 + $0xc] sm:$0xf]
    %v57 = vld [vmem:[%s1 + $0x10] sm:$0xf]
    %v58 = vld [vmem:[%s1 + $0x14] sm:$0xf]
    %v59 = vld [vmem:[%s1 + $0x18] sm:$0xf]
    %v60 = vld [vmem:[%s1 + $0x1c] sm:$0xf]
    %v61 = vld [vmem:[%s1 + $0x20] sm:$0xf]
    %v62 = vld [vmem:[%s1 + $0x24] sm:$0xf]
    %v63 = vld [vmem:[%s1 + $0x28] sm:$0xf]
    %v64 = vld [vmem:[%s1 + $0x2c] sm:$0xf]
    %v65 = vld [vmem:[%s1 + $0x30] sm:$0xf]
    %v66 = vld [vmem:[%s1 + $0x34] sm:$0xf]
    %v67 = vld [vmem:[%s1 + $0x38] sm:$0xf]
    %v68 = vld [vmem:[%s1 + $0x3c] sm:$0xf]
    %70 = vset.pattern.permute.xlu0 0
    %71 = vperm.xlu0 %70, %v20
    %v72 = vpop.permute.xlu0 %71
    %75 = vset.pattern.permute.xlu0 0
    %76 = vperm.xlu0 %75, %v21
    %v77 = vpop.permute.xlu0 %76
    %80 = vset.pattern.permute.xlu0 0
    %81 = vperm.xlu0 %80, %v22
    %v82 = vpop.permute.xlu0 %81
    %85 = vset.pattern.permute.xlu0 0
    %86 = vperm.xlu0 %85, %v23
    %v87 = vpop.permute.xlu0 %86
    %90 = vset.pattern.permute.xlu0 0
    %91 = vperm.xlu0 %90, %v24
    %v92 = vpop.permute.xlu0 %91
    %95 = vset.pattern.permute.xlu0 0
    %96 = vperm.xlu0 %95, %v25
    %v97 = vpop.permute.xlu0 %96
    %100 = vset.pattern.permute.xlu0 0
    %101 = vperm.xlu0 %100, %v26
    %v102 = vpop.permute.xlu0 %101
    %105 = vset.pattern.permute.xlu0 0
    %106 = vperm.xlu0 %105, %v27
    %v107 = vpop.permute.xlu0 %106
    %110 = vset.pattern.permute.xlu0 0
    %111 = vperm.xlu0 %110, %v28
    %v112 = vpop.permute.xlu0 %111
    %115 = vset.pattern.permute.xlu0 0
    %116 = vperm.xlu0 %115, %v29
    %v117 = vpop.permute.xlu0 %116
    %120 = vset.pattern.permute.xlu0 0
    %121 = vperm.xlu0 %120, %v30
    %v122 = vpop.permute.xlu0 %121
    %125 = vset.pattern.permute.xlu0 0
    %126 = vperm.xlu0 %125, %v31
    %v127 = vpop.permute.xlu0 %126
    %130 = vset.pattern.permute.xlu0 0
    %131 = vperm.xlu0 %130, %v32
    %v132 = vpop.permute.xlu0 %131
    %135 = vset.pattern.permute.xlu0 0
    %136 = vperm.xlu0 %135, %v33
    %v137 = vpop.permute.xlu0 %136
    %140 = vset.pattern.permute.xlu0 0
    %141 = vperm.xlu0 %140, %v34
    %v142 = vpop.permute.xlu0 %141
    %145 = vset.pattern.permute.xlu0 0
    %146 = vperm.xlu0 %145, %v35
    %v147 = vpop.permute.xlu0 %146
    %v165 = vunpack.c.l.b16 %v53
    %v166 = vunpack.c.l.b16 %v54
    %v167 = vunpack.c.l.b16 %v55
    %v168 = vunpack.c.l.b16 %v56
    %v169 = vunpack.c.l.b16 %v57
    %v170 = vunpack.c.l.b16 %v58
    %v171 = vunpack.c.l.b16 %v59
    %v172 = vunpack.c.l.b16 %v60
    %v173 = vunpack.c.l.b16 %v61
    %v174 = vunpack.c.l.b16 %v62
    %v175 = vunpack.c.l.b16 %v63
    %v176 = vunpack.c.l.b16 %v64
    %v177 = vunpack.c.l.b16 %v65
    %v178 = vunpack.c.l.b16 %v66
    %v179 = vunpack.c.l.b16 %v67
    %v180 = vunpack.c.l.b16 %v68
    %v181 = vpack.c.b16 %v166, %v165
    %v182 = vpack.c.b16 %v168, %v167
    %v183 = vpack.c.b16 %v170, %v169
    %v184 = vpack.c.b16 %v172, %v171
    %v185 = vpack.c.b16 %v174, %v173
    %v186 = vpack.c.b16 %v176, %v175
    %v187 = vpack.c.b16 %v178, %v177
    %v188 = vpack.c.b16 %v180, %v179
    %v205 = vunpack.c.l.b16 %v37
    %v206 = vunpack.c.l.b16 %v38
    %v207 = vunpack.c.l.b16 %v39
    %v208 = vunpack.c.l.b16 %v40
    %v209 = vunpack.c.l.b16 %v41
    %v210 = vunpack.c.l.b16 %v42
    %v211 = vunpack.c.l.b16 %v43
    %v212 = vunpack.c.l.b16 %v44
    %v213 = vunpack.c.l.b16 %v45
    %v214 = vunpack.c.l.b16 %v46
    %v215 = vunpack.c.l.b16 %v47
    %v216 = vunpack.c.l.b16 %v48
    %v217 = vunpack.c.l.b16 %v49
    %v218 = vunpack.c.l.b16 %v50
    %v219 = vunpack.c.l.b16 %v51
    %v220 = vunpack.c.l.b16 %v52
    %v221 = vpack.c.b16 %v206, %v205
    %v222 = vpack.c.b16 %v208, %v207
    %v223 = vpack.c.b16 %v210, %v209
    %v224 = vpack.c.b16 %v212, %v211
    %v225 = vpack.c.b16 %v214, %v213
    %v226 = vpack.c.b16 %v216, %v215
    %v227 = vpack.c.b16 %v218, %v217
    %v228 = vpack.c.b16 %v220, %v219
    %vm229 = vcmask 261120
    %v231 = vsel %vm229, %v181, 0
    %v234 = vsel %vm229, %v182, 0
    %v237 = vsel %vm229, %v183, 0
    %v240 = vsel %vm229, %v184, 0
    %v243 = vsel %vm229, %v185, 0
    %v246 = vsel %vm229, %v186, 0
    %v249 = vsel %vm229, %v187, 0
    %v252 = vsel %vm229, %v188, 0
    %v255 = vsel %vm229, %v221, 0
    %v258 = vsel %vm229, %v222, 0
    %v261 = vsel %vm229, %v223, 0
    %v264 = vsel %vm229, %v224, 0
    %v267 = vsel %vm229, %v225, 0
    %v270 = vsel %vm229, %v226, 0
    %v273 = vsel %vm229, %v227, 0
    %v276 = vsel %vm229, %v228, 0
    %278 = vmatprep.subr.bf16.mxu0 0
    %279 = vmatpush1.bf16.xpose.msra.mxu0 %v255
    %280 = vmatprep.subr.bf16.mxu0 0
    %281 = vmatpush1.bf16.xpose.msra.mxu0 %v258
    %282 = vmatprep.subr.bf16.mxu0 0
    %283 = vmatpush1.bf16.xpose.msra.mxu0 %v261
    %284 = vmatprep.subr.bf16.mxu0 0
    %285 = vmatpush1.bf16.xpose.msra.mxu0 %v264
    %286 = vmatprep.subr.bf16.mxu0 0
    %287 = vmatpush1.bf16.xpose.msra.mxu0 %v267
    %288 = vmatprep.subr.bf16.mxu0 0
    %289 = vmatpush1.bf16.xpose.msra.mxu0 %v270
    %290 = vmatprep.subr.bf16.mxu0 0
    %291 = vmatpush1.bf16.xpose.msra.mxu0 %v273
    %292 = vmatprep.subr.bf16.mxu0 0
    %293 = vmatpush1.bf16.xpose.msra.mxu0 %v276
    %294 = vmatprep.subr.bf16.mxu0 0
    %295 = vmatpush1.bf16.xpose.msra.mxu0 0
    %296 = vmatprep.subr.bf16.mxu0 0
    %297 = vmatpush1.bf16.xpose.msra.mxu0 0
    %298 = vmatprep.subr.bf16.mxu0 0
    %299 = vmatpush1.bf16.xpose.msra.mxu0 0
    %300 = vmatprep.subr.bf16.mxu0 0
    %301 = vmatpush1.bf16.xpose.msra.mxu0 0
    %302 = vmatprep.subr.bf16.mxu0 0
    %303 = vmatpush1.bf16.xpose.msra.mxu0 0
    %304 = vmatprep.subr.bf16.mxu0 0
    %305 = vmatpush1.bf16.xpose.msra.mxu0 0
    %306 = vmatprep.subr.bf16.mxu0 0
    %307 = vmatpush1.bf16.xpose.msra.mxu0 0
    %308 = vmatprep.subr.bf16.mxu0 0
    %309 = vmatpush1.bf16.xpose.msra.mxu0 0
    %310 = vmatprep.mubr.bf16.mxu0 0
    %311 = vmatmul.mubr.bf16.gmra.mrb[0].mxu0 %v231
    %v312 = vpop.f32.mrb[0].mxu0
    %v313 = vadd.f32 %v72, %v312
    %v314 = vpop.f32.mrb[0].mxu0
    %v315 = vpop.f32.mrb[0].mxu0
    %v316 = vadd.f32 %v77, %v315
    %v317 = vpop.f32.mrb[0].mxu0
    %318 = vmatprep.mubr.bf16.mxu0 0
    %319 = vmatmul.mubr.bf16.gmra.mrb[0].mxu0 %v234
    %v320 = vpop.f32.mrb[0].mxu0
    %v321 = vadd.f32 %v82, %v320
    %v322 = vpop.f32.mrb[0].mxu0
    %v323 = vpop.f32.mrb[0].mxu0
    %v324 = vadd.f32 %v87, %v323
    %v325 = vpop.f32.mrb[0].mxu0
    %326 = vmatprep.mubr.bf16.mxu0 0
    %327 = vmatmul.mubr.bf16.gmra.mrb[0].mxu0 %v237
    %v328 = vpop.f32.mrb[0].mxu0
    %v329 = vadd.f32 %v92, %v328
    %v330 = vpop.f32.mrb[0].mxu0
    %v331 = vpop.f32.mrb[0].mxu0
    %v332 = vadd.f32 %v97, %v331
    %v333 = vpop.f32.mrb[0].mxu0
    %334 = vmatprep.mubr.bf16.mxu0 0
    %335 = vmatmul.mubr.bf16.gmra.mrb[0].mxu0 %v240
    %v336 = vpop.f32.mrb[0].mxu0
    %v337 = vadd.f32 %v102, %v336
    %v338 = vpop.f32.mrb[0].mxu0
    %v339 = vpop.f32.mrb[0].mxu0
    %v340 = vadd.f32 %v107, %v339
    %v341 = vpop.f32.mrb[0].mxu0
    %342 = vmatprep.mubr.bf16.mxu0 0
    %343 = vmatmul.mubr.bf16.gmra.mrb[0].mxu0 %v243
    %v344 = vpop.f32.mrb[0].mxu0
    %v345 = vadd.f32 %v112, %v344
    %v346 = vpop.f32.mrb[0].mxu0
    %v347 = vpop.f32.mrb[0].mxu0
    %v348 = vadd.f32 %v117, %v347
    %v349 = vpop.f32.mrb[0].mxu0
    %350 = vmatprep.mubr.bf16.mxu0 0
    %351 = vmatmul.mubr.bf16.gmra.mrb[0].mxu0 %v246
    %v352 = vpop.f32.mrb[0].mxu0
    %v353 = vadd.f32 %v122, %v352
    %v354 = vpop.f32.mrb[0].mxu0
    %v355 = vpop.f32.mrb[0].mxu0
    %v356 = vadd.f32 %v127, %v355
    %v357 = vpop.f32.mrb[0].mxu0
    %358 = vmatprep.mubr.bf16.mxu0 0
    %359 = vmatmul.mubr.bf16.gmra.mrb[0].mxu0 %v249
    %v360 = vpop.f32.mrb[0].mxu0
    %v361 = vadd.f32 %v132, %v360
    %v362 = vpop.f32.mrb[0].mxu0
    %v363 = vpop.f32.mrb[0].mxu0
    %v364 = vadd.f32 %v137, %v363
    %v365 = vpop.f32.mrb[0].mxu0
    %366 = vmatprep.mubr.bf16.mxu0 0
    %367 = vmatmul.mubr.bf16.gmra.mrb[0].mxu0 %v252
    %v368 = vpop.f32.mrb[0].mxu0
    %v369 = vadd.f32 %v142, %v368
    %v370 = vpop.f32.mrb[0].mxu0
    %v371 = vpop.f32.mrb[0].mxu0
    %v372 = vadd.f32 %v147, %v371
    %v373 = vpop.f32.mrb[0].mxu0
    %374 = vdwg.mxu0
    %v375 = vmax.f32 %v313, 0.0
    %v376 = vmax.f32 %v316, 0.0
    %v377 = vmax.f32 %v321, 0.0
    %v378 = vmax.f32 %v324, 0.0
    %v379 = vmax.f32 %v329, 0.0
    %v380 = vmax.f32 %v332, 0.0
    %v381 = vmax.f32 %v337, 0.0
    %v382 = vmax.f32 %v340, 0.0
    %v383 = vmax.f32 %v345, 0.0
    %v384 = vmax.f32 %v348, 0.0
    %v385 = vmax.f32 %v353, 0.0
    %v386 = vmax.f32 %v356, 0.0
    %v387 = vmax.f32 %v361, 0.0
    %v388 = vmax.f32 %v364, 0.0
    %v389 = vmax.f32 %v369, 0.0
    %v390 = vmax.f32 %v372, 0.0
    %391 = vset.pattern.permute.xlu0 1
    %392 = vperm.xlu0 %391, %v20
    %v393 = vpop.permute.xlu0 %392
    %395 = vset.pattern.permute.xlu0 1
    %396 = vperm.xlu0 %395, %v21
    %v397 = vpop.permute.xlu0 %396
    %399 = vset.pattern.permute.xlu0 1
    %400 = vperm.xlu0 %399, %v22
    %v401 = vpop.permute.xlu0 %400
    %403 = vset.pattern.permute.xlu0 1
    %404 = vperm.xlu0 %403, %v23
    %v405 = vpop.permute.xlu0 %404
    %407 = vset.pattern.permute.xlu0 1
    %408 = vperm.xlu0 %407, %v24
    %v409 = vpop.permute.xlu0 %408
    %411 = vset.pattern.permute.xlu0 1
    %412 = vperm.xlu0 %411, %v25
    %v413 = vpop.permute.xlu0 %412
    %415 = vset.pattern.permute.xlu0 1
    %416 = vperm.xlu0 %415, %v26
    %v417 = vpop.permute.xlu0 %416
    %419 = vset.pattern.permute.xlu0 1
    %420 = vperm.xlu0 %419, %v27
    %v421 = vpop.permute.xlu0 %420
    %423 = vset.pattern.permute.xlu0 1
    %424 = vperm.xlu0 %423, %v28
    %v425 = vpop.permute.xlu0 %424
    %427 = vset.pattern.permute.xlu0 1
    %428 = vperm.xlu0 %427, %v29
    %v429 = vpop.permute.xlu0 %428
    %431 = vset.pattern.permute.xlu0 1
    %432 = vperm.xlu0 %431, %v30
    %v433 = vpop.permute.xlu0 %432
    %435 = vset.pattern.permute.xlu0 1
    %436 = vperm.xlu0 %435, %v31
    %v437 = vpop.permute.xlu0 %436
    %439 = vset.pattern.permute.xlu0 1
    %440 = vperm.xlu0 %439, %v32
    %v441 = vpop.permute.xlu0 %440
    %443 = vset.pattern.permute.xlu0 1
    %444 = vperm.xlu0 %443, %v33
    %v445 = vpop.permute.xlu0 %444
    %447 = vset.pattern.permute.xlu0 1
    %448 = vperm.xlu0 %447, %v34
    %v449 = vpop.permute.xlu0 %448
    %451 = vset.pattern.permute.xlu0 1
    %452 = vperm.xlu0 %451, %v35
    %v453 = vpop.permute.xlu0 %452
    %v455 = vmul.f32 %v375, %v393
    %v456 = vmul.f32 %v376, %v397
    %v457 = vmul.f32 %v377, %v401
    %v458 = vmul.f32 %v378, %v405
    %v459 = vmul.f32 %v379, %v409
    %v460 = vmul.f32 %v380, %v413
    %v461 = vmul.f32 %v381, %v417
    %v462 = vmul.f32 %v382, %v421
    %v463 = vmul.f32 %v383, %v425
    %v464 = vmul.f32 %v384, %v429
    %v465 = vmul.f32 %v385, %v433
    %v466 = vmul.f32 %v386, %v437
    %v467 = vmul.f32 %v387, %v441
    %v468 = vmul.f32 %v388, %v445
    %v469 = vmul.f32 %v389, %v449
    %v470 = vmul.f32 %v390, %v453
    %v471 = vadd.f32 %v455, %v456
    %v472 = vadd.f32 %v471, %v457
    %v473 = vadd.f32 %v472, %v458
    %v474 = vadd.f32 %v473, %v459
    %v475 = vadd.f32 %v474, %v460
    %v476 = vadd.f32 %v475, %v461
    %v477 = vadd.f32 %v476, %v462
    %v478 = vadd.f32 %v477, %v463
    %v479 = vadd.f32 %v478, %v464
    %v480 = vadd.f32 %v479, %v465
    %v481 = vadd.f32 %v480, %v466
    %v482 = vadd.f32 %v481, %v467
    %v483 = vadd.f32 %v482, %v468
    %v484 = vadd.f32 %v483, %v469
    %v485 = vadd.f32 %v484, %v470
    %v486 = vrot.slane %v485, 4
    %v487 = vadd.f32 %v485, %v486
    %v488 = vrot.slane %v487, 2
    %v489 = vadd.f32 %v487, %v488
    %v490 = vrot.slane %v489, 1
    %v491 = vadd.f32 %v489, %v490
    %v492 = vstv %s36
    %v493 = vadd.f32 %v491, %v492
    %494 = vst [vmem:[#allocation3] sm:$0x1] %v493
    // Predicated region
    $region18: #{tpu_custom_call.1} parent=1 // pred_check
      _
    $region19: #{tpu_custom_call.1} parent=1 // pred_check_branch
      %496 = sbr.rel (0) target = $region21
    $region20: #{tpu_custom_call.1} parent=1 // pred_region
      %s498 = ssub.s32 16, 16
      %499 = vsyncadd [#allocation4], %s498
      %s501 = sshll.u32 [#allocation3], 4
      %s502 = int_to_ptr.vmem [resolvable:$true] %s501
      %504 = dma.vmem_to_hbm [thread:$0]  %s502, 16, %s4, [#allocation4]
    $region21: #{tpu_custom_call.1} parent=1 // pred_fallthru
      _
    // Predicated region
    $region22: #{tpu_custom_call.1} parent=1 // pred_check
      _
    $region23: #{tpu_custom_call.1} parent=1 // pred_check_branch
      %506 = sbr.rel (0) target = $region25
    $region24: #{tpu_custom_call.1} parent=1 // pred_region
      %507 = dma.done [#allocation4], 16
    $region25: #{tpu_custom_call.1} parent=1 // pred_fallthru
      _
    %508 = vsyncpa [#allocation4], 1

</llo_original>
